<compile_context>
chip_gen: v7x
topology: tpu7x:2x2x1
jax: 0.10.0
libtpu: 0.0.40
codegen_flags: <defaults>
</compile_context>

<pallas_src>
import functools

import jax
import jax.numpy as jnp
from jax.experimental import pallas as pl
from jax.experimental.pallas import tpu as pltpu


def _vae_single_dim_kernel(x_ref, w1_ref, b1_ref, wh_ref, bh_ref, eps_ref,
                           o_ref, acc_ref, *, dim, latent):
    """One (batch-tile, K-tile) grid step."""
    k = pl.program_id(1)

    # Zero the encoder accumulator at the first K step.
    @pl.when(k == 0)
    def _():
        acc_ref[...] = jnp.zeros_like(acc_ref)

    # encoder partial matmul: bf16 operands, f32 accumulate on the MXU.
    acc_ref[...] += jnp.dot(x_ref[...], w1_ref[...],
                            preferred_element_type=jnp.float32)

    # Finalize on the last K step: bias + ReLU, fused heads, reparameterize,
    # single-column select.
    @pl.when(k == pl.num_programs(1) - 1)
    def _():
        h = jnp.maximum(acc_ref[...] + b1_ref[...], 0.0)          # f32 (TB, H)
        heads = jnp.dot(h.astype(wh_ref.dtype), wh_ref[...],
                        preferred_element_type=jnp.float32) + bh_ref[...]
        mu = heads[:, :latent]
        logvar = heads[:, latent:2 * latent]
        std = jnp.exp(0.5 * logvar)                               # EUP
        z = mu + eps_ref[...] * std                               # VPU
        o_ref[...] = z[:, dim:dim + 1]


def _pick_tile(n, candidates):
    for c in candidates:
        if n % c == 0 and c <= n:
            return c
    return n


def vae_encoder_single_dim(x, params, eps, *, input_dim, dim):
    """JAX wrapper reproducing VAEEncoderSingleDim.forward."""
    if x.shape[1] != input_dim:
        raise ValueError(
            f"Expected input with {input_dim} features, but got {x.shape[1]} "
            f"features.")
    total_elements = x.size
    assert total_elements % input_dim == 0, (
        f"Total elements {total_elements} is not a multiple of input_dim "
        f"{input_dim}")
    batch = x.shape[0]
    x2 = x.reshape(batch, -1)

    w1, b1, wmu, bmu, wlv, blv = params
    hidden = w1.shape[1]
    latent = wmu.shape[1]

    # Fuse mu/logvar heads -> one MXU pass; biases kept 2-D (1, N) f32.
    w_heads = jnp.concatenate([wmu, wlv], axis=1)                 # (H, 2L)
    b_heads = jnp.concatenate([bmu.reshape(1, -1),
                               blv.reshape(1, -1)], axis=1)       # (1, 2L)

    # bf16 matmul operands, f32 everything else.
    x_bf = x2.astype(jnp.bfloat16)
    w1_bf = w1.astype(jnp.bfloat16)
    wh_bf = w_heads.astype(jnp.bfloat16)
    b1_f = b1.reshape(1, -1).astype(jnp.float32)
    bh_f = b_heads.astype(jnp.float32)
    eps_f = eps.astype(jnp.float32)

    # Tile sizes. Batch tile kept modest so v7x (64 MiB VMEM) is safe while
    # still giving >=2 grid steps for its two TensorCores when batch allows.
    tb = _pick_tile(batch, (256, 128, 64, 32, 16, 8))
    # K tile: whole input_dim if small, else a 128-aligned divisor.
    if input_dim <= 1024:
        tk = input_dim
    else:
        tk = _pick_tile(input_dim, (1024, 512, 256, 128))

    grid = (pl.cdiv(batch, tb), pl.cdiv(input_dim, tk))

    cost = pl.CostEstimate(
        flops=2 * batch * input_dim * hidden
              + 2 * batch * hidden * (2 * latent)
              + 6 * batch * latent,
        transcendentals=batch * latent,
        bytes_accessed=(x_bf.size * 2 + w1_bf.size * 2 + wh_bf.size * 2
                        + b1_f.size * 4 + bh_f.size * 4 + eps_f.size * 4
                        + batch * 1 * 4),
    )

    out = pl.pallas_call(
        functools.partial(_vae_single_dim_kernel, dim=dim, latent=latent),
        out_shape=jax.ShapeDtypeStruct((batch, 1), jnp.float32),
        grid_spec=pltpu.PrefetchScalarGridSpec(
            num_scalar_prefetch=0,
            grid=grid,
            in_specs=[
                pl.BlockSpec((tb, tk), lambda i, k: (i, k)),        # x
                pl.BlockSpec((tk, hidden), lambda i, k: (k, 0)),    # w1
                pl.BlockSpec((1, hidden), lambda i, k: (0, 0)),     # b1
                pl.BlockSpec((hidden, 2 * latent),
                             lambda i, k: (0, 0)),                  # w_heads
                pl.BlockSpec((1, 2 * latent), lambda i, k: (0, 0)), # b_heads
                pl.BlockSpec((tb, latent), lambda i, k: (i, 0)),    # eps
            ],
            out_specs=pl.BlockSpec((tb, 1), lambda i, k: (i, 0)),
            scratch_shapes=[pltpu.VMEM((tb, hidden), jnp.float32)],
        ),
        compiler_params=pltpu.CompilerParams(
            dimension_semantics=("parallel", "arbitrary")),
        cost_estimate=cost,
    )(x_bf, w1_bf, b1_f, wh_bf, bh_f, eps_f)
    return out


def _reference(x, params, eps, *, dim):
    """Pure-JAX reference using the same bf16 matmul operands / f32 accum."""
    w1, b1, wmu, bmu, wlv, blv = params
    xb = x.astype(jnp.bfloat16)
    h = jnp.maximum(
        jnp.dot(xb, w1.astype(jnp.bfloat16),
                preferred_element_type=jnp.float32) + b1.reshape(1, -1), 0.0)
    hb = h.astype(jnp.bfloat16)
    mu = jnp.dot(hb, wmu.astype(jnp.bfloat16),
                 preferred_element_type=jnp.float32) + bmu.reshape(1, -1)
    logvar = jnp.dot(hb, wlv.astype(jnp.bfloat16),
                     preferred_element_type=jnp.float32) + blv.reshape(1, -1)
    z = mu + eps * jnp.exp(0.5 * logvar)
    return z[:, dim:dim + 1]


if __name__ == "__main__":
    # Small, module-consistent shapes.
    BATCH, INPUT_DIM, HIDDEN, LATENT = 16, 32, 64, 16
    DIM = 3  # latent dimension to extract

    key = jax.random.PRNGKey(0)
    kx, kw1, kb1, kwmu, kbmu, kwlv, kblv, keps = jax.random.split(key, 8)

    x = jax.random.normal(kx, (BATCH, INPUT_DIM), dtype=jnp.float32)

    # Deterministic synthetic parameters, stored as (in, out) for direct x @ W.
    # NOTE: a real PyTorch nn.Linear state_dict stores (out, in) and would need
    # a transpose before being handed to this wrapper.
    scale = 0.1
    w1 = scale * jax.random.normal(kw1, (INPUT_DIM, HIDDEN), dtype=jnp.float32)
    b1 = scale * jax.random.normal(kb1, (1, HIDDEN), dtype=jnp.float32)
    wmu = scale * jax.random.normal(kwmu, (HIDDEN, LATENT), dtype=jnp.float32)
    bmu = scale * jax.random.normal(kbmu, (1, LATENT), dtype=jnp.float32)
    wlv = scale * jax.random.normal(kwlv, (HIDDEN, LATENT), dtype=jnp.float32)
    blv = scale * jax.random.normal(kblv, (1, LATENT), dtype=jnp.float32)
    params = (w1, b1, wmu, bmu, wlv, blv)

    # Deterministic eps for reparameterize (reproducible "randn_like").
    eps = jax.random.normal(keps, (BATCH, LATENT), dtype=jnp.float32)

    out = vae_encoder_single_dim(x, params, eps, input_dim=INPUT_DIM, dim=DIM)
    out = jax.block_until_ready(out)

    ref = _reference(x.reshape(BATCH, -1), params, eps, dim=DIM)
    assert out.shape == (BATCH, 1), out.shape
    assert jnp.allclose(out, ref, atol=1e-3, rtol=1e-3), (out, ref)

    print("KERNEL_OK")
</pallas_src>

<mosaic_0001>
module attributes {stable_mosaic.version = 11 : i64} {
  func.func @_vae_single_dim_kernel(%arg0: i32, %arg1: i32, %arg2: memref<16x32xbf16, #tpu.memory_space<vmem>>, %arg3: memref<32x64xbf16, #tpu.memory_space<vmem>>, %arg4: memref<1x64xf32, #tpu.memory_space<vmem>>, %arg5: memref<64x32xbf16, #tpu.memory_space<vmem>>, %arg6: memref<1x32xf32, #tpu.memory_space<vmem>>, %arg7: memref<16x16xf32, #tpu.memory_space<vmem>>, %arg8: memref<16x1xf32, #tpu.memory_space<vmem>>, %arg9: memref<16x64xf32, #tpu.memory_space<vmem>>) attributes {dimension_semantics = [#tpu.dimension_semantics<parallel>, #tpu.dimension_semantics<arbitrary>], iteration_bounds = array<i64: 1, 1>, scalar_prefetch = 0 : i64, scratch_operands = 1 : i64, tpu.core_type = #tpu.core_type<tc>, window_params = [{transform_indices = @transform_0, window_bounds = array<i64: 16, 32>}, {transform_indices = @transform_1, window_bounds = array<i64: 32, 64>}, {pipeline_mode = #tpu.pipeline_mode<synchronous>, transform_indices = @transform_2, window_bounds = array<i64: 1, 64>}, {pipeline_mode = #tpu.pipeline_mode<synchronous>, transform_indices = @transform_3, window_bounds = array<i64: 64, 32>}, {pipeline_mode = #tpu.pipeline_mode<synchronous>, transform_indices = @transform_4, window_bounds = array<i64: 1, 32>}, {transform_indices = @transform_5, window_bounds = array<i64: 16, 16>}, {transform_indices = @transform_6, window_bounds = array<i64: 16, 1>}]} {
    %c0_i32 = arith.constant 0 : i32
    %0 = arith.cmpi eq, %arg1, %c0_i32 : i32
    %1 = arith.extui %0 : i1 to i32
    %c0_i32_0 = arith.constant 0 : i32
    %2 = arith.cmpi ne, %1, %c0_i32_0 : i32
    scf.if %2 {
      %cst_10 = arith.constant 0.000000e+00 : f32
      %12 = vector.broadcast %cst_10 : f32 to vector<16x64xf32>
      %c0_11 = arith.constant 0 : index
      %c0_12 = arith.constant 0 : index
      %13 = vector.load %arg9[%c0_11, %c0_12] : memref<16x64xf32, #tpu.memory_space<vmem>>, vector<16x64xf32>
      tpu.vector_store %arg9[%c0_11, %c0_12], %12 {strides = array<i32>} : memref<16x64xf32, #tpu.memory_space<vmem>>, vector<16x64xf32>,
    } else {
    }
    %c0 = arith.constant 0 : index
    %c0_1 = arith.constant 0 : index
    %3 = vector.load %arg9[%c0, %c0_1] : memref<16x64xf32, #tpu.memory_space<vmem>>, vector<16x64xf32>
    %c0_2 = arith.constant 0 : index
    %c0_3 = arith.constant 0 : index
    %4 = vector.load %arg2[%c0_2, %c0_3] : memref<16x32xbf16, #tpu.memory_space<vmem>>, vector<16x32xbf16>
    %c0_4 = arith.constant 0 : index
    %c0_5 = arith.constant 0 : index
    %5 = vector.load %arg3[%c0_4, %c0_5] : memref<32x64xbf16, #tpu.memory_space<vmem>>, vector<32x64xbf16>
    %cst = arith.constant dense<0.000000e+00> : vector<16x64xf32>
    %6 = tpu.matmul %4, %5, %cst {dimension_numbers = #tpu.dot_dimension_numbers<[1], [0], [0], [1], [0, 0, 1, 1], [], []>} : vector<16x32xbf16>, vector<32x64xbf16>, vector<16x64xf32> -> vector<16x64xf32>
    %7 = arith.addf %3, %6 : vector<16x64xf32>
    %c0_6 = arith.constant 0 : index
    %c0_7 = arith.constant 0 : index
    %8 = vector.load %arg9[%c0_6, %c0_7] : memref<16x64xf32, #tpu.memory_space<vmem>>, vector<16x64xf32>
    tpu.vector_store %arg9[%c0_6, %c0_7], %7 {strides = array<i32>} : memref<16x64xf32, #tpu.memory_space<vmem>>, vector<16x64xf32>,
    %c0_i32_8 = arith.constant 0 : i32
    %9 = arith.cmpi eq, %arg1, %c0_i32_8 : i32
    %10 = arith.extui %9 : i1 to i32
    %c0_i32_9 = arith.constant 0 : i32
    %11 = arith.cmpi ne, %10, %c0_i32_9 : i32
    scf.if %11 {
      %c0_10 = arith.constant 0 : index
      %c0_11 = arith.constant 0 : index
      %12 = vector.load %arg9[%c0_10, %c0_11] : memref<16x64xf32, #tpu.memory_space<vmem>>, vector<16x64xf32>
      %c0_12 = arith.constant 0 : index
      %c0_13 = arith.constant 0 : index
      %13 = vector.load %arg4[%c0_12, %c0_13] : memref<1x64xf32, #tpu.memory_space<vmem>>, vector<1x64xf32>
      %14 = vector.broadcast %13 : vector<1x64xf32> to vector<16x64xf32>
      %15 = arith.addf %12, %14 : vector<16x64xf32>
      %cst_14 = arith.constant 0.000000e+00 : f32
      %16 = vector.broadcast %cst_14 : f32 to vector<16x64xf32>
      %17 = arith.maximumf %15, %16 : vector<16x64xf32>
      %18 = arith.truncf %17 : vector<16x64xf32> to vector<16x64xbf16>
      %c0_15 = arith.constant 0 : index
      %c0_16 = arith.constant 0 : index
      %19 = vector.load %arg5[%c0_15, %c0_16] : memref<64x32xbf16, #tpu.memory_space<vmem>>, vector<64x32xbf16>
      %cst_17 = arith.constant dense<0.000000e+00> : vector<16x32xf32>
      %20 = tpu.matmul %18, %19, %cst_17 {dimension_numbers = #tpu.dot_dimension_numbers<[1], [0], [0], [1], [0, 0, 1, 1], [], []>} : vector<16x64xbf16>, vector<64x32xbf16>, vector<16x32xf32> -> vector<16x32xf32>
      %c0_18 = arith.constant 0 : index
      %c0_19 = arith.constant 0 : index
      %21 = vector.load %arg6[%c0_18, %c0_19] : memref<1x32xf32, #tpu.memory_space<vmem>>, vector<1x32xf32>
      %22 = vector.broadcast %21 : vector<1x32xf32> to vector<16x32xf32>
      %23 = arith.addf %20, %22 : vector<16x32xf32>
      %24 = vector.extract_strided_slice %23 {offsets = [0, 0], sizes = [16, 16], strides = [1, 1]} : vector<16x32xf32> to vector<16x16xf32>
      %25 = vector.extract_strided_slice %23 {offsets = [0, 16], sizes = [16, 16], strides = [1, 1]} : vector<16x32xf32> to vector<16x16xf32>
      %cst_20 = arith.constant 5.000000e-01 : f32
      %26 = vector.broadcast %cst_20 : f32 to vector<16x16xf32>
      %27 = arith.mulf %26, %25 : vector<16x16xf32>
      %28 = math.exp %27 : vector<16x16xf32>
      %c0_21 = arith.constant 0 : index
      %c0_22 = arith.constant 0 : index
      %29 = vector.load %arg7[%c0_21, %c0_22] : memref<16x16xf32, #tpu.memory_space<vmem>>, vector<16x16xf32>
      %30 = arith.mulf %29, %28 : vector<16x16xf32>
      %31 = arith.addf %24, %30 : vector<16x16xf32>
      %32 = vector.extract_strided_slice %31 {offsets = [0, 3], sizes = [16, 1], strides = [1, 1]} : vector<16x16xf32> to vector<16x1xf32>
      %c0_23 = arith.constant 0 : index
      %c0_24 = arith.constant 0 : index
      %33 = vector.load %arg8[%c0_23, %c0_24] : memref<16x1xf32, #tpu.memory_space<vmem>>, vector<16x1xf32>
      tpu.vector_store %arg8[%c0_23, %c0_24], %32 {strides = array<i32>} : memref<16x1xf32, #tpu.memory_space<vmem>>, vector<16x1xf32>,
    } else {
    }
    return
  }
  func.func @transform_0(%arg0: i32, %arg1: i32) -> (i32, i32) {
    %c0_i32 = arith.constant 0 : i32
    return %arg0, %arg1 : i32, i32
  }
  func.func @transform_1(%arg0: i32, %arg1: i32) -> (i32, i32) {
    %c0_i32 = arith.constant 0 : i32
    %c0_i32_0 = arith.constant 0 : i32
    return %arg1, %c0_i32 : i32, i32
  }
  func.func @transform_2(%arg0: i32, %arg1: i32) -> (i32, i32) {
    %c0_i32 = arith.constant 0 : i32
    %c0_i32_0 = arith.constant 0 : i32
    %c0_i32_1 = arith.constant 0 : i32
    return %c0_i32, %c0_i32_0 : i32, i32
  }
  func.func @transform_3(%arg0: i32, %arg1: i32) -> (i32, i32) {
    %c0_i32 = arith.constant 0 : i32
    %c0_i32_0 = arith.constant 0 : i32
    %c0_i32_1 = arith.constant 0 : i32
    return %c0_i32, %c0_i32_0 : i32, i32
  }
  func.func @transform_4(%arg0: i32, %arg1: i32) -> (i32, i32) {
    %c0_i32 = arith.constant 0 : i32
    %c0_i32_0 = arith.constant 0 : i32
    %c0_i32_1 = arith.constant 0 : i32
    return %c0_i32, %c0_i32_0 : i32, i32
  }
  func.func @transform_5(%arg0: i32, %arg1: i32) -> (i32, i32) {
    %c0_i32 = arith.constant 0 : i32
    %c0_i32_0 = arith.constant 0 : i32
    return %arg0, %c0_i32 : i32, i32
  }
  func.func @transform_6(%arg0: i32, %arg1: i32) -> (i32, i32) {
    %c0_i32 = arith.constant 0 : i32
    %c0_i32_0 = arith.constant 0 : i32
    return %arg0, %c0_i32 : i32, i32
  }
}

</mosaic_0001>

<llo_original>
// kernel: tpu_custom_call.1
$region0: #{tpu_custom_call.1}
  #allocation0 [shape = 'u32[]', space=smem, size = 0x4, offset = 0x4, fixed_abs, tag = 'smem constant byte address 0x4 - core index']
  #allocation1 [shape = 'u32[144,128]{1,0:T(1,128)}', space=vmem, size = 0x12000, scoped, tag = 'internal scratch']
  #allocation2 [shape = 'f32[16,64]{1,0:T(8,128)}', space=vmem, size = 0x2000, scoped, tag = 'scratch operand']
  %s0 = inlined_call_operand.vmem [shape: bf16[16,32], index: 0, kind: input, shape index: {}]
  %s1 = inlined_call_operand.vmem [shape: bf16[32,64], index: 1, kind: input, shape index: {}]
  %s2 = inlined_call_operand.vmem [shape: f32[1,64], index: 2, kind: input, shape index: {}]
  %s3 = inlined_call_operand.vmem [shape: bf16[64,32], index: 3, kind: input, shape index: {}]
  %s4 = inlined_call_operand.vmem [shape: f32[1,32], index: 4, kind: input, shape index: {}]
  %s5 = inlined_call_operand.vmem [shape: f32[16,16], index: 5, kind: input, shape index: {}]
  %s6 = inlined_call_operand.vmem [shape: f32[16,1], index: 6, kind: output, shape index: {}]
  %s7 = sld [smem:[#allocation0]]
  $region42: #{tpu_custom_call.1} parent=0
    _
  %s9 = ssub.s32 1, %s7
  %s10 = scalar_select 0, %s9, %s7
  // Predicated region
  $region2: #{tpu_custom_call.1} parent=0 // pred_check
    _
  $region3: #{tpu_custom_call.1} parent=0 // pred_check_branch
    %12 = sbr.rel (0) target = $region5
  $region4: #{tpu_custom_call.1} parent=0 // pred_region
    _
  $region5: #{tpu_custom_call.1} parent=0 // pred_fallthru
    _
  // Predicated region
  $region6: #{tpu_custom_call.1} parent=0 // pred_check
    _
  $region7: #{tpu_custom_call.1} parent=0 // pred_check_branch
    %14 = sbr.rel (0) target = $region9
  $region8: #{tpu_custom_call.1} parent=0 // pred_region
    _
  $region9: #{tpu_custom_call.1} parent=0 // pred_fallthru
    _
  // Predicated region
  $region10: #{tpu_custom_call.1} parent=0 // pred_check
    _
  $region11: #{tpu_custom_call.1} parent=0 // pred_check_branch
    %16 = sbr.rel (0) target = $region13
  $region12: #{tpu_custom_call.1} parent=0 // pred_region
    _
  $region13: #{tpu_custom_call.1} parent=0 // pred_fallthru
    _
  // Predicated region
  $region14: #{tpu_custom_call.1} parent=0 // pred_check
    _
  $region15: #{tpu_custom_call.1} parent=0 // pred_check_branch
    %18 = sbr.rel (0) target = $region17
  $region16: #{tpu_custom_call.1} parent=0 // pred_region
    _
  $region17: #{tpu_custom_call.1} parent=0 // pred_fallthru
    _
  // Predicated region
  $region18: #{tpu_custom_call.1} parent=0 // pred_check
    _
  $region19: #{tpu_custom_call.1} parent=0 // pred_check_branch
    %20 = sbr.rel (0) target = $region21
  $region20: #{tpu_custom_call.1} parent=0 // pred_region
    _
  $region21: #{tpu_custom_call.1} parent=0 // pred_fallthru
    _
  // Predicated region
  $region22: #{tpu_custom_call.1} parent=0 // pred_check
    _
  $region23: #{tpu_custom_call.1} parent=0 // pred_check_branch
    %22 = sbr.rel (0) target = $region25
  $region24: #{tpu_custom_call.1} parent=0 // pred_region
    _
  $region25: #{tpu_custom_call.1} parent=0 // pred_fallthru
    _
  %p24 = scmp.eq.s32.totalorder 0, 0
  // Predicated region
  $region26: #{tpu_custom_call.1} parent=0 // pred_check
    %p25 = pneg %p24
  $region27: #{tpu_custom_call.1} parent=0 // pred_check_branch
    %27 = sbr.rel (%p25) target = $region29
  $region28: #{tpu_custom_call.1} parent=0 // pred_region
    %vm28 = vcmask 523264
    %29 = vst.msk [vmem:[#allocation2] sm:$0xff] %vm28, 0.0
    %30 = vst.msk [vmem:[#allocation2 + $0x8] sm:$0xff] %vm28, 0.0
  $region29: #{tpu_custom_call.1} parent=0 // pred_fallthru
    _
  %v31 = vld [vmem:[#allocation2] sm:$0xff]
  %v32 = vld [vmem:[#allocation2 + $0x8] sm:$0xff]
  %v33 = vld [vmem:[%s0] sm:$0xf]
  %v34 = vld [vmem:[%s0 + $0x4] sm:$0xf]
  %v35 = vld [vmem:[%s1] sm:$0xf]
  %v36 = vld [vmem:[%s1 + $0x4] sm:$0xf]
  %v37 = vld [vmem:[%s1 + $0x8] sm:$0xf]
  %v38 = vld [vmem:[%s1 + $0xc] sm:$0xf]
  %v41 = vunpack.c.l.b16 %v33
  %v42 = vunpack.c.l.b16 %v34
  %v43 = vpack.c.b16 %v42, %v41
  %v48 = vunpack.c.l.b16 %v35
  %v49 = vunpack.c.l.b16 %v36
  %v50 = vunpack.c.l.b16 %v37
  %v51 = vunpack.c.l.b16 %v38
  %v52 = vpack.c.b16 %v49, %v48
  %v53 = vpack.c.b16 %v51, %v50
  %vm56 = vcmask 261120
  %v58 = vsel %vm56, %v43, 0
  %60 = vmatprep.subr.bf16.mxu0 0
  %61 = vmatpush1.bf16.msra.mxu0 %v52
  %62 = vmatprep.subr.bf16.mxu0 0
  %63 = vmatpush1.bf16.msra.mxu0 %v53
  %64 = vmatprep.subr.bf16.mxu0 0
  %65 = vmatpush1.bf16.msra.mxu0 0
  %66 = vmatprep.subr.bf16.mxu0 0
  %67 = vmatpush1.bf16.msra.mxu0 0
  %68 = vmatprep.subr.bf16.mxu0 0
  %69 = vmatpush1.bf16.msra.mxu0 0
  %70 = vmatprep.subr.bf16.mxu0 0
  %71 = vmatpush1.bf16.msra.mxu0 0
  %72 = vmatprep.subr.bf16.mxu0 0
  %73 = vmatpush1.bf16.msra.mxu0 0
  %74 = vmatprep.subr.bf16.mxu0 0
  %75 = vmatpush1.bf16.msra.mxu0 0
  %76 = vmatprep.subr.bf16.mxu0 0
  %77 = vmatpush1.bf16.msra.mxu0 0
  %78 = vmatprep.subr.bf16.mxu0 0
  %79 = vmatpush1.bf16.msra.mxu0 0
  %80 = vmatprep.subr.bf16.mxu0 0
  %81 = vmatpush1.bf16.msra.mxu0 0
  %82 = vmatprep.subr.bf16.mxu0 0
  %83 = vmatpush1.bf16.msra.mxu0 0
  %84 = vmatprep.subr.bf16.mxu0 0
  %85 = vmatpush1.bf16.msra.mxu0 0
  %86 = vmatprep.subr.bf16.mxu0 0
  %87 = vmatpush1.bf16.msra.mxu0 0
  %88 = vmatprep.subr.bf16.mxu0 0
  %89 = vmatpush1.bf16.msra.mxu0 0
  %90 = vmatprep.subr.bf16.mxu0 0
  %91 = vmatpush1.bf16.msra.mxu0 0
  %92 = vmatprep.mubr.bf16.mxu0 0
  %93 = vmatmul.mubr.bf16.gmra.mrb[0].mxu0 %v58
  %v94 = vpop.f32.mrb[0].mxu0
  %v95 = vadd.f32 0.0, %v94
  %v96 = vpop.f32.mrb[0].mxu0
  %v97 = vpop.f32.mrb[0].mxu0
  %v98 = vadd.f32 0.0, %v97
  %v99 = vpop.f32.mrb[0].mxu0
  %100 = vdwg.mxu0
  %v101 = vadd.f32 %v31, %v95
  %v102 = vadd.f32 %v32, %v98
  %vm103 = vcmask 523264
  %104 = vst.msk [vmem:[#allocation2] sm:$0xff] %vm103, %v101
  %105 = vst.msk [vmem:[#allocation2 + $0x8] sm:$0xff] %vm103, %v102
  // Predicated region
  $region30: #{tpu_custom_call.1} parent=0 // pred_check
    %p106 = pneg %p24
  $region31: #{tpu_custom_call.1} parent=0 // pred_check_branch
    %108 = sbr.rel (%p106) target = $region33
  $region32: #{tpu_custom_call.1} parent=0 // pred_region
    %v109 = vld [vmem:[#allocation2] sm:$0xff]
    %v110 = vld [vmem:[#allocation2 + $0x8] sm:$0xff]
    %v111 = vld [vmem:[%s2] sm:$0x1]
    %v113 = vlaneseq
    %v114 = vshrl.u32 %v113, 7
    %v115 = vsub.s32 0, %v114
    %v116 = vrot.slane %v111, %v115
    %v118 = vadd.f32 %v109, %v116
    %v119 = vadd.f32 %v110, %v116
    %v120 = vmax.f32 %v118, 0.0
    %v121 = vmax.f32 %v119, 0.0
    %v122 = vpack.c.bf16 %v121, %v120
    %v123 = vld [vmem:[%s3] sm:$0xf]
    %v124 = vld [vmem:[%s3 + $0x4] sm:$0xf]
    %v125 = vld [vmem:[%s3 + $0x8] sm:$0xf]
    %v126 = vld [vmem:[%s3 + $0xc] sm:$0xf]
    %v127 = vld [vmem:[%s3 + $0x10] sm:$0xf]
    %v128 = vld [vmem:[%s3 + $0x14] sm:$0xf]
    %v129 = vld [vmem:[%s3 + $0x18] sm:$0xf]
    %v130 = vld [vmem:[%s3 + $0x1c] sm:$0xf]
    %v131 = vld [vmem:[%s4] sm:$0x1]
    %v133 = vlaneseq
    %v134 = vshrl.u32 %v133, 7
    %v135 = vsub.s32 0, %v134
    %v136 = vrot.slane %v131, %v135
    %v146 = vunpack.c.l.b16 %v123
    %v147 = vunpack.c.l.b16 %v124
    %v148 = vunpack.c.l.b16 %v125
    %v149 = vunpack.c.l.b16 %v126
    %v150 = vunpack.c.l.b16 %v127
    %v151 = vunpack.c.l.b16 %v128
    %v152 = vunpack.c.l.b16 %v129
    %v153 = vunpack.c.l.b16 %v130
    %v154 = vpack.c.b16 %v147, %v146
    %v155 = vpack.c.b16 %v149, %v148
    %v156 = vpack.c.b16 %v151, %v150
    %v157 = vpack.c.b16 %v153, %v152
    %v163 = vsel %vm103, %v122, 0
    %165 = vmatprep.subr.bf16.mxu0 0
    %166 = vmatpush1.bf16.msra.mxu0 %v154
    %167 = vmatprep.subr.bf16.mxu0 0
    %168 = vmatpush1.bf16.msra.mxu0 %v155
    %169 = vmatprep.subr.bf16.mxu0 0
    %170 = vmatpush1.bf16.msra.mxu0 %v156
    %171 = vmatprep.subr.bf16.mxu0 0
    %172 = vmatpush1.bf16.msra.mxu0 %v157
    %173 = vmatprep.subr.bf16.mxu0 0
    %174 = vmatpush1.bf16.msra.mxu0 0
    %175 = vmatprep.subr.bf16.mxu0 0
    %176 = vmatpush1.bf16.msra.mxu0 0
    %177 = vmatprep.subr.bf16.mxu0 0
    %178 = vmatpush1.bf16.msra.mxu0 0
    %179 = vmatprep.subr.bf16.mxu0 0
    %180 = vmatpush1.bf16.msra.mxu0 0
    %181 = vmatprep.subr.bf16.mxu0 0
    %182 = vmatpush1.bf16.msra.mxu0 0
    %183 = vmatprep.subr.bf16.mxu0 0
    %184 = vmatpush1.bf16.msra.mxu0 0
    %185 = vmatprep.subr.bf16.mxu0 0
    %186 = vmatpush1.bf16.msra.mxu0 0
    %187 = vmatprep.subr.bf16.mxu0 0
    %188 = vmatpush1.bf16.msra.mxu0 0
    %189 = vmatprep.subr.bf16.mxu0 0
    %190 = vmatpush1.bf16.msra.mxu0 0
    %191 = vmatprep.subr.bf16.mxu0 0
    %192 = vmatpush1.bf16.msra.mxu0 0
    %193 = vmatprep.subr.bf16.mxu0 0
    %194 = vmatpush1.bf16.msra.mxu0 0
    %195 = vmatprep.subr.bf16.mxu0 0
    %196 = vmatpush1.bf16.msra.mxu0 0
    %197 = vmatprep.mubr.bf16.mxu0 0
    %198 = vmatmul.mubr.bf16.gmra.mrb[0].mxu0 %v163
    %v199 = vpop.f32.mrb[0].mxu0
    %v200 = vadd.f32 %v136, %v199
    %v201 = vpop.f32.mrb[0].mxu0
    %v202 = vpop.f32.mrb[0].mxu0
    %v203 = vadd.f32 %v136, %v202
    %v204 = vpop.f32.mrb[0].mxu0
    %205 = vdwg.mxu0
    %v206 = vmul.f32 %v200, 0.5
    %v207 = vmul.f32 %v203, 0.5
    %v208 = vmul.f32 %v206, 1.442695
    %v209 = vpow.pop %v208
    %v210 = vmul.f32 %v207, 1.442695
    %v211 = vpow.pop %v210
    %v212 = vld [vmem:[%s5] sm:$0xff]
    %v213 = vld [vmem:[%s5 + $0x8] sm:$0xff]
    %216 = vrot.lane.b32.xlu0 %v209, 112
    %v217 = vpop.permute.xlu0 %216
    %218 = vrot.lane.b32.xlu0 %v211, 112
    %v219 = vpop.permute.xlu0 %218
    %v222 = vmul.f32 %v212, %v217
    %v223 = vmul.f32 %v213, %v219
    %v224 = vadd.f32 %v200, %v222
    %v225 = vadd.f32 %v203, %v223
    %228 = vrot.lane.b32.xlu0 %v224, 125
    %v229 = vpop.permute.xlu0 %228
    %230 = vrot.lane.b32.xlu0 %v225, 125
    %v231 = vpop.permute.xlu0 %230
    %vm234 = vcmask 7168
    %235 = vst.msk [vmem:[%s6] sm:$0xff] %vm234, %v229
    %236 = vst.msk [vmem:[%s6 + $0x8] sm:$0xff] %vm234, %v231
  $region33: #{tpu_custom_call.1} parent=0 // pred_fallthru
    _
  // Predicated region
  $region34: #{tpu_custom_call.1} parent=0 // pred_check
    _
  $region35: #{tpu_custom_call.1} parent=0 // pred_check_branch
    %238 = sbr.rel (0) target = $region37
  $region36: #{tpu_custom_call.1} parent=0 // pred_region
    _
  $region37: #{tpu_custom_call.1} parent=0 // pred_fallthru
    _
  // Predicated region
  $region38: #{tpu_custom_call.1} parent=0 // pred_check
    _
  $region39: #{tpu_custom_call.1} parent=0 // pred_check_branch
    %240 = sbr.rel (0) target = $region41
  $region40: #{tpu_custom_call.1} parent=0 // pred_region
    _
  $region41: #{tpu_custom_call.1} parent=0 // pred_fallthru
    _

</llo_original>
